<compile_context>
chip_gen: v7x
topology: tpu7x:2x2x1
jax: 0.10.0
libtpu: 0.0.40
codegen_flags: <defaults>
</compile_context>

<pallas_src>
import functools

import jax
import jax.numpy as jnp
from jax.experimental import pallas as pl
from jax.experimental.pallas import tpu as pltpu


# ----------------------------------------------------------------------------
# Fused forward kernel: normalization + dynamics_net MLP + output affine +
# velocity_head, one (TM, dim) batch tile per grid step.
# ----------------------------------------------------------------------------
def _forward_kernel(z_ref, in_loc, inv_in_scale, out_loc, out_scale,
                    dw1, db1, dw2, db2, dw3, db3, vw_full, vb, out_ref):
    z = z_ref[...]

    # input normalization (precomputed reciprocal -> cheap VPU multiply)
    net_input = (z - in_loc[...]) * inv_in_scale[...]

    # dynamics_net: Linear -> Tanh -> Linear -> Tanh -> Linear
    h = jnp.tanh(jnp.dot(net_input, dw1[...],
                         preferred_element_type=jnp.float32) + db1[...])
    h = jnp.tanh(jnp.dot(h, dw2[...],
                         preferred_element_type=jnp.float32) + db2[...])
    dyn = jnp.dot(h, dw3[...], preferred_element_type=jnp.float32) + db3[...]
    dp_dt = out_scale[...] * dyn + out_loc[...]

    # velocity_head(p): vw_full = [0; vw] so z @ vw_full == p @ vw  (v == p,
    # since Minv is exactly the identity in the reference module).
    dq_dt = jnp.dot(z, vw_full[...], preferred_element_type=jnp.float32) + vb[...]

    # one lane-dense full-block store
    out_ref[...] = jnp.concatenate([dq_dt, dp_dt], axis=-1)


def _round_up(x, m):
    return ((x + m - 1) // m) * m


def mechanics_forward(t, z, params, tm=256):
    """Pallas forward pass. z: (batch, dim) with dim = 2 * half."""
    del t  # unused when self.u is None
    bsz, dim = z.shape
    half = dim // 2

    # Fold velocity_head into a (dim, half) weight acting on full z (top rows 0).
    vw_full = jnp.concatenate(
        [jnp.zeros((half, half), params["vw"].dtype), params["vw"]], axis=0)
    inv_input_scale = 1.0 / params["input_scale"]

    # Choose a batch tile that is a multiple of 8 sublanes; pad batch to fit.
    tm = min(tm, _round_up(bsz, 8))
    padded_b = _round_up(bsz, tm)
    z_in = z if padded_b == bsz else jnp.pad(z, ((0, padded_b - bsz), (0, 0)))

    def full_spec(arr):
        # small resident param: full-extent block, same block every grid step
        return pl.BlockSpec(arr.shape, lambda i: (0,) * arr.ndim)

    weights = (params["input_loc"], inv_input_scale,
               params["output_loc"], params["output_scale"],
               params["dw1"], params["db1"], params["dw2"], params["db2"],
               params["dw3"], params["db3"], vw_full, params["vb"])

    out = pl.pallas_call(
        _forward_kernel,
        out_shape=jax.ShapeDtypeStruct((padded_b, dim), jnp.float32),
        grid=(padded_b // tm,),
        in_specs=[pl.BlockSpec((tm, dim), lambda i: (i, 0))]
                 + [full_spec(w) for w in weights],
        out_specs=pl.BlockSpec((tm, dim), lambda i: (i, 0)),
        compiler_params=pltpu.CompilerParams(
            dimension_semantics=("parallel",)),
    )(z_in, *weights)

    return out[:bsz]


# ----------------------------------------------------------------------------
# Pure-JAX reference (keeps the full mass_net / Minv math) for a sanity check.
# ----------------------------------------------------------------------------
def mechanics_forward_ref(t, z, params):
    del t
    bsz, dim = z.shape
    half = dim // 2
    net_input = (z - params["input_loc"]) / params["input_scale"]
    q, p = z[:, :half], z[:, half:]

    def mlp(x, w1, b1, w2, b2, w3, b3):
        h = jnp.tanh(x @ w1 + b1)
        h = jnp.tanh(h @ w2 + b2)
        return h @ w3 + b3

    m = mlp(q, params["mw1"], params["mb1"], params["mw2"], params["mb2"],
            params["mw3"], params["mb3"]).reshape(bsz, half, half)
    res = jnp.triu(m, k=1)
    diag = jnp.diagonal(m, axis1=-2, axis2=-1)
    res = res + jax.nn.softplus(diag)[..., :, None] * jnp.eye(half, dtype=m.dtype)
    L = jnp.swapaxes(res, -1, -2) * 0.0
    mi = jnp.einsum("bij,bkj->bik", L, L) + jnp.eye(half, dtype=z.dtype)
    v = jnp.einsum("bij,bj->bi", mi, p)

    dq_dt = v @ params["vw"] + params["vb"]
    dp_dt = params["output_scale"] * mlp(net_input, params["dw1"], params["db1"],
                                         params["dw2"], params["db2"],
                                         params["dw3"], params["db3"]) + params["output_loc"]
    return jnp.concatenate([dq_dt, dp_dt], axis=-1)


# ----------------------------------------------------------------------------
# Deterministic parameter init (shapes per MechanicsNN.__init__); weights are
# stored as (in_features, out_features), i.e. PyTorch nn.Linear.weight.T.
# ----------------------------------------------------------------------------
def init_params(key, input_size, output_size, hidden_size):
    half = output_size // 2
    keys = jax.random.split(key, 7)

    def lin(k, fan_in, fan_out):
        kw, kb = jax.random.split(k)
        w = 0.1 * jax.random.normal(kw, (fan_in, fan_out), jnp.float32)
        b = 0.1 * jax.random.normal(kb, (1, fan_out), jnp.float32)
        return w, b

    dw1, db1 = lin(keys[0], input_size, hidden_size)
    dw2, db2 = lin(keys[1], hidden_size, hidden_size)
    dw3, db3 = lin(keys[2], hidden_size, half)
    vw, vb = lin(keys[3], half, half)
    # mass_net params kept only for the reference implementation; the Pallas
    # path elides them because the module multiplies tril_Minv by 0.
    mw1, mb1 = lin(keys[4], half, hidden_size)
    mw2, mb2 = lin(keys[5], hidden_size, hidden_size)
    mw3, mb3 = lin(keys[6], hidden_size, half * half)

    return dict(
        dw1=dw1, db1=db1, dw2=dw2, db2=db2, dw3=dw3, db3=db3,
        vw=vw, vb=vb,
        mw1=mw1, mb1=mb1, mw2=mw2, mb2=mb2, mw3=mw3, mb3=mb3,
        input_loc=jnp.zeros((1, input_size), jnp.float32),   # registered buffers
        input_scale=jnp.ones((1, input_size), jnp.float32),
        output_loc=jnp.zeros((1, half), jnp.float32),
        output_scale=jnp.ones((1, half), jnp.float32),
    )


if __name__ == "__main__":
    # TODO(synk): integrate()/odeint and the torch.solve inside M() are outside
    # the forward() hot path and are not implemented here.
    key = jax.random.PRNGKey(0)
    k_params, k_z = jax.random.split(key)

    batch = 64
    input_size = 8       # z = [q | p], each of size 4
    output_size = 8
    hidden_size = 32

    params = init_params(k_params, input_size, output_size, hidden_size)
    z = jax.random.normal(k_z, (batch, input_size), jnp.float32)
    t = jnp.float32(0.0)

    out = jax.block_until_ready(mechanics_forward(t, z, params, tm=32))
    ref = mechanics_forward_ref(t, z, params)

    assert out.shape == (batch, output_size), out.shape
    assert jnp.allclose(out, ref, atol=2e-3, rtol=2e-3), float(jnp.max(jnp.abs(out - ref)))
    print("KERNEL_OK")
</pallas_src>

<mosaic_0001>
module attributes {stable_mosaic.version = 11 : i64} {
  func.func @_forward_kernel(%arg0: i32, %arg1: memref<32x8xf32, #tpu.memory_space<vmem>>, %arg2: memref<1x8xf32, #tpu.memory_space<vmem>>, %arg3: memref<1x8xf32, #tpu.memory_space<vmem>>, %arg4: memref<1x4xf32, #tpu.memory_space<vmem>>, %arg5: memref<1x4xf32, #tpu.memory_space<vmem>>, %arg6: memref<8x32xf32, #tpu.memory_space<vmem>>, %arg7: memref<1x32xf32, #tpu.memory_space<vmem>>, %arg8: memref<32x32xf32, #tpu.memory_space<vmem>>, %arg9: memref<1x32xf32, #tpu.memory_space<vmem>>, %arg10: memref<32x4xf32, #tpu.memory_space<vmem>>, %arg11: memref<1x4xf32, #tpu.memory_space<vmem>>, %arg12: memref<8x4xf32, #tpu.memory_space<vmem>>, %arg13: memref<1x4xf32, #tpu.memory_space<vmem>>, %arg14: memref<32x8xf32, #tpu.memory_space<vmem>>) attributes {dimension_semantics = [#tpu.dimension_semantics<parallel>], iteration_bounds = array<i64: 2>, scalar_prefetch = 0 : i64, scratch_operands = 0 : i64, tpu.core_type = #tpu.core_type<tc>, window_params = [{transform_indices = @transform_0, window_bounds = array<i64: 32, 8>}, {pipeline_mode = #tpu.pipeline_mode<synchronous>, transform_indices = @transform_1, window_bounds = array<i64: 1, 8>}, {pipeline_mode = #tpu.pipeline_mode<synchronous>, transform_indices = @transform_2, window_bounds = array<i64: 1, 8>}, {pipeline_mode = #tpu.pipeline_mode<synchronous>, transform_indices = @transform_3, window_bounds = array<i64: 1, 4>}, {pipeline_mode = #tpu.pipeline_mode<synchronous>, transform_indices = @transform_4, window_bounds = array<i64: 1, 4>}, {pipeline_mode = #tpu.pipeline_mode<synchronous>, transform_indices = @transform_5, window_bounds = array<i64: 8, 32>}, {pipeline_mode = #tpu.pipeline_mode<synchronous>, transform_indices = @transform_6, window_bounds = array<i64: 1, 32>}, {pipeline_mode = #tpu.pipeline_mode<synchronous>, transform_indices = @transform_7, window_bounds = array<i64: 32, 32>}, {pipeline_mode = #tpu.pipeline_mode<synchronous>, transform_indices = @transform_8, window_bounds = array<i64: 1, 32>}, {pipeline_mode = #tpu.pipeline_mode<synchronous>, transform_indices = @transform_9, window_bounds = array<i64: 32, 4>}, {pipeline_mode = #tpu.pipeline_mode<synchronous>, transform_indices = @transform_10, window_bounds = array<i64: 1, 4>}, {pipeline_mode = #tpu.pipeline_mode<synchronous>, transform_indices = @transform_11, window_bounds = array<i64: 8, 4>}, {pipeline_mode = #tpu.pipeline_mode<synchronous>, transform_indices = @transform_12, window_bounds = array<i64: 1, 4>}, {transform_indices = @transform_13, window_bounds = array<i64: 32, 8>}]} {
    %c0 = arith.constant 0 : index
    %c0_0 = arith.constant 0 : index
    %0 = vector.load %arg1[%c0, %c0_0] : memref<32x8xf32, #tpu.memory_space<vmem>>, vector<32x8xf32>
    %c0_1 = arith.constant 0 : index
    %c0_2 = arith.constant 0 : index
    %1 = vector.load %arg2[%c0_1, %c0_2] : memref<1x8xf32, #tpu.memory_space<vmem>>, vector<1x8xf32>
    %2 = vector.broadcast %1 : vector<1x8xf32> to vector<32x8xf32>
    %3 = arith.subf %0, %2 : vector<32x8xf32>
    %c0_3 = arith.constant 0 : index
    %c0_4 = arith.constant 0 : index
    %4 = vector.load %arg3[%c0_3, %c0_4] : memref<1x8xf32, #tpu.memory_space<vmem>>, vector<1x8xf32>
    %5 = vector.broadcast %4 : vector<1x8xf32> to vector<32x8xf32>
    %6 = arith.mulf %3, %5 : vector<32x8xf32>
    %c0_5 = arith.constant 0 : index
    %c0_6 = arith.constant 0 : index
    %7 = vector.load %arg6[%c0_5, %c0_6] : memref<8x32xf32, #tpu.memory_space<vmem>>, vector<8x32xf32>
    %cst = arith.constant dense<0.000000e+00> : vector<32x32xf32>
    %8 = tpu.matmul %6, %7, %cst {dimension_numbers = #tpu.dot_dimension_numbers<[1], [0], [0], [1], [0, 0, 1, 1], [], []>} : vector<32x8xf32>, vector<8x32xf32>, vector<32x32xf32> -> vector<32x32xf32>
    %c0_7 = arith.constant 0 : index
    %c0_8 = arith.constant 0 : index
    %9 = vector.load %arg7[%c0_7, %c0_8] : memref<1x32xf32, #tpu.memory_space<vmem>>, vector<1x32xf32>
    %10 = vector.broadcast %9 : vector<1x32xf32> to vector<32x32xf32>
    %11 = arith.addf %8, %10 : vector<32x32xf32>
    %12 = math.tanh %11 : vector<32x32xf32>
    %c0_9 = arith.constant 0 : index
    %c0_10 = arith.constant 0 : index
    %13 = vector.load %arg8[%c0_9, %c0_10] : memref<32x32xf32, #tpu.memory_space<vmem>>, vector<32x32xf32>
    %cst_11 = arith.constant dense<0.000000e+00> : vector<32x32xf32>
    %14 = tpu.matmul %12, %13, %cst_11 {dimension_numbers = #tpu.dot_dimension_numbers<[1], [0], [0], [1], [0, 0, 1, 1], [], []>} : vector<32x32xf32>, vector<32x32xf32>, vector<32x32xf32> -> vector<32x32xf32>
    %c0_12 = arith.constant 0 : index
    %c0_13 = arith.constant 0 : index
    %15 = vector.load %arg9[%c0_12, %c0_13] : memref<1x32xf32, #tpu.memory_space<vmem>>, vector<1x32xf32>
    %16 = vector.broadcast %15 : vector<1x32xf32> to vector<32x32xf32>
    %17 = arith.addf %14, %16 : vector<32x32xf32>
    %18 = math.tanh %17 : vector<32x32xf32>
    %c0_14 = arith.constant 0 : index
    %c0_15 = arith.constant 0 : index
    %19 = vector.load %arg10[%c0_14, %c0_15] : memref<32x4xf32, #tpu.memory_space<vmem>>, vector<32x4xf32>
    %cst_16 = arith.constant dense<0.000000e+00> : vector<32x4xf32>
    %20 = tpu.matmul %18, %19, %cst_16 {dimension_numbers = #tpu.dot_dimension_numbers<[1], [0], [0], [1], [0, 0, 1, 1], [], []>} : vector<32x32xf32>, vector<32x4xf32>, vector<32x4xf32> -> vector<32x4xf32>
    %c0_17 = arith.constant 0 : index
    %c0_18 = arith.constant 0 : index
    %21 = vector.load %arg11[%c0_17, %c0_18] : memref<1x4xf32, #tpu.memory_space<vmem>>, vector<1x4xf32>
    %22 = vector.broadcast %21 : vector<1x4xf32> to vector<32x4xf32>
    %23 = arith.addf %20, %22 : vector<32x4xf32>
    %c0_19 = arith.constant 0 : index
    %c0_20 = arith.constant 0 : index
    %24 = vector.load %arg5[%c0_19, %c0_20] : memref<1x4xf32, #tpu.memory_space<vmem>>, vector<1x4xf32>
    %25 = vector.broadcast %24 : vector<1x4xf32> to vector<32x4xf32>
    %26 = arith.mulf %25, %23 : vector<32x4xf32>
    %c0_21 = arith.constant 0 : index
    %c0_22 = arith.constant 0 : index
    %27 = vector.load %arg4[%c0_21, %c0_22] : memref<1x4xf32, #tpu.memory_space<vmem>>, vector<1x4xf32>
    %28 = vector.broadcast %27 : vector<1x4xf32> to vector<32x4xf32>
    %29 = arith.addf %26, %28 : vector<32x4xf32>
    %c0_23 = arith.constant 0 : index
    %c0_24 = arith.constant 0 : index
    %30 = vector.load %arg12[%c0_23, %c0_24] : memref<8x4xf32, #tpu.memory_space<vmem>>, vector<8x4xf32>
    %cst_25 = arith.constant dense<0.000000e+00> : vector<32x4xf32>
    %31 = tpu.matmul %0, %30, %cst_25 {dimension_numbers = #tpu.dot_dimension_numbers<[1], [0], [0], [1], [0, 0, 1, 1], [], []>} : vector<32x8xf32>, vector<8x4xf32>, vector<32x4xf32> -> vector<32x4xf32>
    %c0_26 = arith.constant 0 : index
    %c0_27 = arith.constant 0 : index
    %32 = vector.load %arg13[%c0_26, %c0_27] : memref<1x4xf32, #tpu.memory_space<vmem>>, vector<1x4xf32>
    %33 = vector.broadcast %32 : vector<1x4xf32> to vector<32x4xf32>
    %34 = arith.addf %31, %33 : vector<32x4xf32>
    %35 = tpu.concatenate %34, %29 in 1 : vector<32x4xf32>, vector<32x4xf32> -> vector<32x8xf32>
    %c0_28 = arith.constant 0 : index
    %c0_29 = arith.constant 0 : index
    %36 = vector.load %arg14[%c0_28, %c0_29] : memref<32x8xf32, #tpu.memory_space<vmem>>, vector<32x8xf32>
    tpu.vector_store %arg14[%c0_28, %c0_29], %35 {strides = array<i32>} : memref<32x8xf32, #tpu.memory_space<vmem>>, vector<32x8xf32>,
    return
  }
  func.func @transform_0(%arg0: i32) -> (i32, i32) {
    %c0_i32 = arith.constant 0 : i32
    %c0_i32_0 = arith.constant 0 : i32
    return %arg0, %c0_i32 : i32, i32
  }
  func.func @transform_1(%arg0: i32) -> (i32, i32) {
    %c0_i32 = arith.constant 0 : i32
    %c0_i32_0 = arith.constant 0 : i32
    %c0_i32_1 = arith.constant 0 : i32
    return %c0_i32, %c0_i32_0 : i32, i32
  }
  func.func @transform_2(%arg0: i32) -> (i32, i32) {
    %c0_i32 = arith.constant 0 : i32
    %c0_i32_0 = arith.constant 0 : i32
    %c0_i32_1 = arith.constant 0 : i32
    return %c0_i32, %c0_i32_0 : i32, i32
  }
  func.func @transform_3(%arg0: i32) -> (i32, i32) {
    %c0_i32 = arith.constant 0 : i32
    %c0_i32_0 = arith.constant 0 : i32
    %c0_i32_1 = arith.constant 0 : i32
    return %c0_i32, %c0_i32_0 : i32, i32
  }
  func.func @transform_4(%arg0: i32) -> (i32, i32) {
    %c0_i32 = arith.constant 0 : i32
    %c0_i32_0 = arith.constant 0 : i32
    %c0_i32_1 = arith.constant 0 : i32
    return %c0_i32, %c0_i32_0 : i32, i32
  }
  func.func @transform_5(%arg0: i32) -> (i32, i32) {
    %c0_i32 = arith.constant 0 : i32
    %c0_i32_0 = arith.constant 0 : i32
    %c0_i32_1 = arith.constant 0 : i32
    return %c0_i32, %c0_i32_0 : i32, i32
  }
  func.func @transform_6(%arg0: i32) -> (i32, i32) {
    %c0_i32 = arith.constant 0 : i32
    %c0_i32_0 = arith.constant 0 : i32
    %c0_i32_1 = arith.constant 0 : i32
    return %c0_i32, %c0_i32_0 : i32, i32
  }
  func.func @transform_7(%arg0: i32) -> (i32, i32) {
    %c0_i32 = arith.constant 0 : i32
    %c0_i32_0 = arith.constant 0 : i32
    %c0_i32_1 = arith.constant 0 : i32
    return %c0_i32, %c0_i32_0 : i32, i32
  }
  func.func @transform_8(%arg0: i32) -> (i32, i32) {
    %c0_i32 = arith.constant 0 : i32
    %c0_i32_0 = arith.constant 0 : i32
    %c0_i32_1 = arith.constant 0 : i32
    return %c0_i32, %c0_i32_0 : i32, i32
  }
  func.func @transform_9(%arg0: i32) -> (i32, i32) {
    %c0_i32 = arith.constant 0 : i32
    %c0_i32_0 = arith.constant 0 : i32
    %c0_i32_1 = arith.constant 0 : i32
    return %c0_i32, %c0_i32_0 : i32, i32
  }
  func.func @transform_10(%arg0: i32) -> (i32, i32) {
    %c0_i32 = arith.constant 0 : i32
    %c0_i32_0 = arith.constant 0 : i32
    %c0_i32_1 = arith.constant 0 : i32
    return %c0_i32, %c0_i32_0 : i32, i32
  }
  func.func @transform_11(%arg0: i32) -> (i32, i32) {
    %c0_i32 = arith.constant 0 : i32
    %c0_i32_0 = arith.constant 0 : i32
    %c0_i32_1 = arith.constant 0 : i32
    return %c0_i32, %c0_i32_0 : i32, i32
  }
  func.func @transform_12(%arg0: i32) -> (i32, i32) {
    %c0_i32 = arith.constant 0 : i32
    %c0_i32_0 = arith.constant 0 : i32
    %c0_i32_1 = arith.constant 0 : i32
    return %c0_i32, %c0_i32_0 : i32, i32
  }
  func.func @transform_13(%arg0: i32) -> (i32, i32) {
    %c0_i32 = arith.constant 0 : i32
    %c0_i32_0 = arith.constant 0 : i32
    return %arg0, %c0_i32 : i32, i32
  }
}

</mosaic_0001>

<llo_original>
// kernel: tpu_custom_call.1
$region0: #{tpu_custom_call.1}
  #allocation0 [shape = 'u32[]', space=smem, size = 0x4, offset = 0x4, fixed_abs, tag = 'smem constant byte address 0x4 - core index']
  #allocation1 [shape = 'u32[144,128]{1,0:T(1,128)}', space=vmem, size = 0x12000, scoped, tag = 'internal scratch']
  %s0 = inlined_call_operand.vmem [shape: f32[64,8], index: 0, kind: input, shape index: {}]
  %s1 = inlined_call_operand.vmem [shape: f32[1,8], index: 1, kind: input, shape index: {}]
  %s2 = inlined_call_operand.vmem [shape: f32[1,8], index: 2, kind: input, shape index: {}]
  %s3 = inlined_call_operand.vmem [shape: f32[1,4], index: 3, kind: input, shape index: {}]
  %s4 = inlined_call_operand.vmem [shape: f32[1,4], index: 4, kind: input, shape index: {}]
  %s5 = inlined_call_operand.vmem [shape: f32[8,32], index: 5, kind: input, shape index: {}]
  %s6 = inlined_call_operand.vmem [shape: f32[1,32], index: 6, kind: input, shape index: {}]
  %s7 = inlined_call_operand.vmem [shape: f32[32,32], index: 7, kind: input, shape index: {}]
  %s8 = inlined_call_operand.vmem [shape: f32[1,32], index: 8, kind: input, shape index: {}]
  %s9 = inlined_call_operand.vmem [shape: f32[32,4], index: 9, kind: input, shape index: {}]
  %s10 = inlined_call_operand.vmem [shape: f32[1,4], index: 10, kind: input, shape index: {}]
  %s11 = inlined_call_operand.vmem [shape: f32[8,4], index: 11, kind: input, shape index: {}]
  %s12 = inlined_call_operand.vmem [shape: f32[1,4], index: 12, kind: input, shape index: {}]
  %s13 = inlined_call_operand.vmem [shape: f32[64,8], index: 13, kind: output, shape index: {}]
  %s14 = sld [smem:[#allocation0]]
  $region85: #{tpu_custom_call.1} parent=0
    _
  %s16 = ssub.s32 1, %s14
  %s17 = scalar_select 0, %s16, %s14
  loop: start=0, step=1, limit=4
  $region2: #{tpu_custom_call.1} parent=0 // loop_pre_header
    _
  $region3: #{tpu_custom_call.1} parent=0 // loop_header
    %s19 = sphi 0, %s23
    %p20 = scmp.ge.s32.totalorder %s19, 4
    %s29 = sphi 0, %s31
    %s32 = sphi 0, %s29
    %s33 = sphi 0, %s32
    %s49 = sphi 0, %s33
    %s53 = sphi 0, %s53
    %s55 = sphi 0, %s53
    %s56 = sphi 0, %s55
    %s70 = sphi 0, %s56
    %s74 = sphi 0, %s74
    %s76 = sphi 0, %s74
    %s77 = sphi 0, %s76
    %s91 = sphi 0, %s77
    %s95 = sphi 0, %s95
    %s97 = sphi 0, %s95
    %s98 = sphi 0, %s97
    %s112 = sphi 0, %s98
    %s116 = sphi 0, %s116
    %s118 = sphi 0, %s116
    %s119 = sphi 0, %s118
    %s133 = sphi 0, %s119
    %s137 = sphi 0, %s137
    %s139 = sphi 0, %s137
    %s140 = sphi 0, %s139
    %s154 = sphi 0, %s140
    %s158 = sphi 0, %s158
    %s160 = sphi 0, %s158
    %s161 = sphi 0, %s160
    %s175 = sphi 0, %s161
    %s179 = sphi 0, %s179
    %s181 = sphi 0, %s179
    %s182 = sphi 0, %s181
    %s196 = sphi 0, %s182
    %s200 = sphi 0, %s200
    %s202 = sphi 0, %s200
    %s203 = sphi 0, %s202
    %s217 = sphi 0, %s203
    %s221 = sphi 0, %s221
    %s223 = sphi 0, %s221
    %s224 = sphi 0, %s223
    %s238 = sphi 0, %s224
    %s242 = sphi 0, %s242
    %s244 = sphi 0, %s242
    %s245 = sphi 0, %s244
    %s259 = sphi 0, %s245
    %s263 = sphi 0, %s263
    %s265 = sphi 0, %s263
    %s266 = sphi 0, %s265
    %s280 = sphi 0, %s266
    %s284 = sphi 0, %s284
    %s286 = sphi 0, %s284
    %s287 = sphi 0, %s286
    %s301 = sphi 0, %s287
    %s307 = sphi 0, %s309
    %s310 = sphi 0, %s307
    %s311 = sphi 0, %s310
    %s327 = sphi 0, %s311
  $region4: #{tpu_custom_call.1} parent=0 // loop_header_branch
    %22 = sbr.rel (%p20) target = $region8
  $region5: #{tpu_custom_call.1} parent=0 // loop_body
    %s24 = ssub.s32 %s19, 1
    %s25 = ssub.s32 %s19, 2
    %s26 = sadd.s32 %s19, 1
    %s27 = ssub.s32 %s19, %s26
    %p28 = scmp.eq.s32.totalorder %s27, 0
    %s30 = sadd.s32 %s29, 1
    %s31 = scalar_select %p28, %s29, %s30
    %p34 = pneg %p28
    %p35 = scmp.eq.s32.totalorder %s19, 1
    %p36 = por %p34, %p35
    %p37 = scmp.ne.s32.totalorder %s29, %s32
    %p38 = scmp.eq.s32.totalorder %s19, 0
    %p39 = por %p37, %p38
    %p40 = scmp.ne.s32.totalorder %s29, %s32
    %p41 = scmp.eq.s32.totalorder %s24, 1
    %p42 = por %p40, %p41
    %p43 = scmp.ne.s32.totalorder %s32, %s33
    %p44 = scmp.eq.s32.totalorder %s24, 0
    %p45 = por %p43, %p44
    %p46 = scmp.ne.s32.totalorder %s32, %s33
    %p47 = scmp.eq.s32.totalorder %s25, 1
    %p48 = por %p46, %p47
    %p50 = scmp.ne.s32.totalorder %s33, %s49
    %p51 = scmp.eq.s32.totalorder %s25, 0
    %p52 = por %p50, %p51
    %s54 = sadd.s32 %s53, 1
    %p57 = scmp.eq.s32.totalorder %s19, 1
    %p58 = scmp.ne.s32.totalorder %s53, %s55
    %p59 = scmp.eq.s32.totalorder %s19, 0
    %p60 = por %p58, %p59
    %p61 = scmp.ne.s32.totalorder %s53, %s55
    %p62 = scmp.eq.s32.totalorder %s24, 1
    %p63 = por %p61, %p62
    %p64 = scmp.ne.s32.totalorder %s55, %s56
    %p65 = scmp.eq.s32.totalorder %s24, 0
    %p66 = por %p64, %p65
    %p67 = scmp.ne.s32.totalorder %s55, %s56
    %p68 = scmp.eq.s32.totalorder %s25, 1
    %p69 = por %p67, %p68
    %p71 = scmp.ne.s32.totalorder %s56, %s70
    %p72 = scmp.eq.s32.totalorder %s25, 0
    %p73 = por %p71, %p72
    %s75 = sadd.s32 %s74, 1
    %p78 = scmp.eq.s32.totalorder %s19, 1
    %p79 = scmp.ne.s32.totalorder %s74, %s76
    %p80 = scmp.eq.s32.totalorder %s19, 0
    %p81 = por %p79, %p80
    %p82 = scmp.ne.s32.totalorder %s74, %s76
    %p83 = scmp.eq.s32.totalorder %s24, 1
    %p84 = por %p82, %p83
    %p85 = scmp.ne.s32.totalorder %s76, %s77
    %p86 = scmp.eq.s32.totalorder %s24, 0
    %p87 = por %p85, %p86
    %p88 = scmp.ne.s32.totalorder %s76, %s77
    %p89 = scmp.eq.s32.totalorder %s25, 1
    %p90 = por %p88, %p89
    %p92 = scmp.ne.s32.totalorder %s77, %s91
    %p93 = scmp.eq.s32.totalorder %s25, 0
    %p94 = por %p92, %p93
    %s96 = sadd.s32 %s95, 1
    %p99 = scmp.eq.s32.totalorder %s19, 1
    %p100 = scmp.ne.s32.totalorder %s95, %s97
    %p101 = scmp.eq.s32.totalorder %s19, 0
    %p102 = por %p100, %p101
    %p103 = scmp.ne.s32.totalorder %s95, %s97
    %p104 = scmp.eq.s32.totalorder %s24, 1
    %p105 = por %p103, %p104
    %p106 = scmp.ne.s32.totalorder %s97, %s98
    %p107 = scmp.eq.s32.totalorder %s24, 0
    %p108 = por %p106, %p107
    %p109 = scmp.ne.s32.totalorder %s97, %s98
    %p110 = scmp.eq.s32.totalorder %s25, 1
    %p111 = por %p109, %p110
    %p113 = scmp.ne.s32.totalorder %s98, %s112
    %p114 = scmp.eq.s32.totalorder %s25, 0
    %p115 = por %p113, %p114
    %s117 = sadd.s32 %s116, 1
    %p120 = scmp.eq.s32.totalorder %s19, 1
    %p121 = scmp.ne.s32.totalorder %s116, %s118
    %p122 = scmp.eq.s32.totalorder %s19, 0
    %p123 = por %p121, %p122
    %p124 = scmp.ne.s32.totalorder %s116, %s118
    %p125 = scmp.eq.s32.totalorder %s24, 1
    %p126 = por %p124, %p125
    %p127 = scmp.ne.s32.totalorder %s118, %s119
    %p128 = scmp.eq.s32.totalorder %s24, 0
    %p129 = por %p127, %p128
    %p130 = scmp.ne.s32.totalorder %s118, %s119
    %p131 = scmp.eq.s32.totalorder %s25, 1
    %p132 = por %p130, %p131
    %p134 = scmp.ne.s32.totalorder %s119, %s133
    %p135 = scmp.eq.s32.totalorder %s25, 0
    %p136 = por %p134, %p135
    %s138 = sadd.s32 %s137, 1
    %p141 = scmp.eq.s32.totalorder %s19, 1
    %p142 = scmp.ne.s32.totalorder %s137, %s139
    %p143 = scmp.eq.s32.totalorder %s19, 0
    %p144 = por %p142, %p143
    %p145 = scmp.ne.s32.totalorder %s137, %s139
    %p146 = scmp.eq.s32.totalorder %s24, 1
    %p147 = por %p145, %p146
    %p148 = scmp.ne.s32.totalorder %s139, %s140
    %p149 = scmp.eq.s32.totalorder %s24, 0
    %p150 = por %p148, %p149
    %p151 = scmp.ne.s32.totalorder %s139, %s140
    %p152 = scmp.eq.s32.totalorder %s25, 1
    %p153 = por %p151, %p152
    %p155 = scmp.ne.s32.totalorder %s140, %s154
    %p156 = scmp.eq.s32.totalorder %s25, 0
    %p157 = por %p155, %p156
    %s159 = sadd.s32 %s158, 1
    %p162 = scmp.eq.s32.totalorder %s19, 1
    %p163 = scmp.ne.s32.totalorder %s158, %s160
    %p164 = scmp.eq.s32.totalorder %s19, 0
    %p165 = por %p163, %p164
    %p166 = scmp.ne.s32.totalorder %s158, %s160
    %p167 = scmp.eq.s32.totalorder %s24, 1
    %p168 = por %p166, %p167
    %p169 = scmp.ne.s32.totalorder %s160, %s161
    %p170 = scmp.eq.s32.totalorder %s24, 0
    %p171 = por %p169, %p170
    %p172 = scmp.ne.s32.totalorder %s160, %s161
    %p173 = scmp.eq.s32.totalorder %s25, 1
    %p174 = por %p172, %p173
    %p176 = scmp.ne.s32.totalorder %s161, %s175
    %p177 = scmp.eq.s32.totalorder %s25, 0
    %p178 = por %p176, %p177
    %s180 = sadd.s32 %s179, 1
    %p183 = scmp.eq.s32.totalorder %s19, 1
    %p184 = scmp.ne.s32.totalorder %s179, %s181
    %p185 = scmp.eq.s32.totalorder %s19, 0
    %p186 = por %p184, %p185
    %p187 = scmp.ne.s32.totalorder %s179, %s181
    %p188 = scmp.eq.s32.totalorder %s24, 1
    %p189 = por %p187, %p188
    %p190 = scmp.ne.s32.totalorder %s181, %s182
    %p191 = scmp.eq.s32.totalorder %s24, 0
    %p192 = por %p190, %p191
    %p193 = scmp.ne.s32.totalorder %s181, %s182
    %p194 = scmp.eq.s32.totalorder %s25, 1
    %p195 = por %p193, %p194
    %p197 = scmp.ne.s32.totalorder %s182, %s196
    %p198 = scmp.eq.s32.totalorder %s25, 0
    %p199 = por %p197, %p198
    %s201 = sadd.s32 %s200, 1
    %p204 = scmp.eq.s32.totalorder %s19, 1
    %p205 = scmp.ne.s32.totalorder %s200, %s202
    %p206 = scmp.eq.s32.totalorder %s19, 0
    %p207 = por %p205, %p206
    %p208 = scmp.ne.s32.totalorder %s200, %s202
    %p209 = scmp.eq.s32.totalorder %s24, 1
    %p210 = por %p208, %p209
    %p211 = scmp.ne.s32.totalorder %s202, %s203
    %p212 = scmp.eq.s32.totalorder %s24, 0
    %p213 = por %p211, %p212
    %p214 = scmp.ne.s32.totalorder %s202, %s203
    %p215 = scmp.eq.s32.totalorder %s25, 1
    %p216 = por %p214, %p215
    %p218 = scmp.ne.s32.totalorder %s203, %s217
    %p219 = scmp.eq.s32.totalorder %s25, 0
    %p220 = por %p218, %p219
    %s222 = sadd.s32 %s221, 1
    %p225 = scmp.eq.s32.totalorder %s19, 1
    %p226 = scmp.ne.s32.totalorder %s221, %s223
    %p227 = scmp.eq.s32.totalorder %s19, 0
    %p228 = por %p226, %p227
    %p229 = scmp.ne.s32.totalorder %s221, %s223
    %p230 = scmp.eq.s32.totalorder %s24, 1
    %p231 = por %p229, %p230
    %p232 = scmp.ne.s32.totalorder %s223, %s224
    %p233 = scmp.eq.s32.totalorder %s24, 0
    %p234 = por %p232, %p233
    %p235 = scmp.ne.s32.totalorder %s223, %s224
    %p236 = scmp.eq.s32.totalorder %s25, 1
    %p237 = por %p235, %p236
    %p239 = scmp.ne.s32.totalorder %s224, %s238
    %p240 = scmp.eq.s32.totalorder %s25, 0
    %p241 = por %p239, %p240
    %s243 = sadd.s32 %s242, 1
    %p246 = scmp.eq.s32.totalorder %s19, 1
    %p247 = scmp.ne.s32.totalorder %s242, %s244
    %p248 = scmp.eq.s32.totalorder %s19, 0
    %p249 = por %p247, %p248
    %p250 = scmp.ne.s32.totalorder %s242, %s244
    %p251 = scmp.eq.s32.totalorder %s24, 1
    %p252 = por %p250, %p251
    %p253 = scmp.ne.s32.totalorder %s244, %s245
    %p254 = scmp.eq.s32.totalorder %s24, 0
    %p255 = por %p253, %p254
    %p256 = scmp.ne.s32.totalorder %s244, %s245
    %p257 = scmp.eq.s32.totalorder %s25, 1
    %p258 = por %p256, %p257
    %p260 = scmp.ne.s32.totalorder %s245, %s259
    %p261 = scmp.eq.s32.totalorder %s25, 0
    %p262 = por %p260, %p261
    %s264 = sadd.s32 %s263, 1
    %p267 = scmp.eq.s32.totalorder %s19, 1
    %p268 = scmp.ne.s32.totalorder %s263, %s265
    %p269 = scmp.eq.s32.totalorder %s19, 0
    %p270 = por %p268, %p269
    %p271 = scmp.ne.s32.totalorder %s263, %s265
    %p272 = scmp.eq.s32.totalorder %s24, 1
    %p273 = por %p271, %p272
    %p274 = scmp.ne.s32.totalorder %s265, %s266
    %p275 = scmp.eq.s32.totalorder %s24, 0
    %p276 = por %p274, %p275
    %p277 = scmp.ne.s32.totalorder %s265, %s266
    %p278 = scmp.eq.s32.totalorder %s25, 1
    %p279 = por %p277, %p278
    %p281 = scmp.ne.s32.totalorder %s266, %s280
    %p282 = scmp.eq.s32.totalorder %s25, 0
    %p283 = por %p281, %p282
    %s285 = sadd.s32 %s284, 1
    %p288 = scmp.eq.s32.totalorder %s19, 1
    %p289 = scmp.ne.s32.totalorder %s284, %s286
    %p290 = scmp.eq.s32.totalorder %s19, 0
    %p291 = por %p289, %p290
    %p292 = scmp.ne.s32.totalorder %s284, %s286
    %p293 = scmp.eq.s32.totalorder %s24, 1
    %p294 = por %p292, %p293
    %p295 = scmp.ne.s32.totalorder %s286, %s287
    %p296 = scmp.eq.s32.totalorder %s24, 0
    %p297 = por %p295, %p296
    %p298 = scmp.ne.s32.totalorder %s286, %s287
    %p299 = scmp.eq.s32.totalorder %s25, 1
    %p300 = por %p298, %p299
    %p302 = scmp.ne.s32.totalorder %s287, %s301
    %p303 = scmp.eq.s32.totalorder %s25, 0
    %p304 = por %p302, %p303
    %s305 = ssub.s32 %s19, %s26
    %p306 = scmp.eq.s32.totalorder %s305, 0
    %s308 = sadd.s32 %s307, 1
    %s309 = scalar_select %p306, %s307, %s308
    %p312 = pneg %p306
    %p313 = scmp.eq.s32.totalorder %s19, 1
    %p314 = por %p312, %p313
    %p315 = scmp.ne.s32.totalorder %s307, %s310
    %p316 = scmp.eq.s32.totalorder %s19, 0
    %p317 = por %p315, %p316
    %p318 = scmp.ne.s32.totalorder %s307, %s310
    %p319 = scmp.eq.s32.totalorder %s24, 1
    %p320 = por %p318, %p319
    %p321 = scmp.ne.s32.totalorder %s310, %s311
    %p322 = scmp.eq.s32.totalorder %s24, 0
    %p323 = por %p321, %p322
    %p324 = scmp.ne.s32.totalorder %s310, %s311
    %p325 = scmp.eq.s32.totalorder %s25, 1
    %p326 = por %p324, %p325
    %p328 = scmp.ne.s32.totalorder %s311, %s327
    %p329 = scmp.eq.s32.totalorder %s25, 0
    %p330 = por %p328, %p329
    %p331 = scmp.le.s32.totalorder 1, %s19
    %p332 = scmp.lt.s32.totalorder %s19, 3
    %p333 = pnand %p331, %p332
    %p334 = pneg %p333
    // Predicated region
    $region9: #{tpu_custom_call.1} parent=5 // pred_check
      _
    $region10: #{tpu_custom_call.1} parent=5 // pred_check_branch
      %336 = sbr.rel (%p333) target = $region12
    $region11: #{tpu_custom_call.1} parent=5 // pred_region
      %s337 = ssub.s32 %s19, 1
      // Predicated region
      $region13: #{tpu_custom_call.1} parent=11 // pred_check
        %p338 = pneg %p66
      $region14: #{tpu_custom_call.1} parent=11 // pred_check_branch
        %340 = sbr.rel (%p338) target = $region16
      $region15: #{tpu_custom_call.1} parent=11 // pred_region
        _
      $region16: #{tpu_custom_call.1} parent=11 // pred_fallthru
        _
      // Predicated region
      $region17: #{tpu_custom_call.1} parent=11 // pred_check
        %p341 = pneg %p87
      $region18: #{tpu_custom_call.1} parent=11 // pred_check_branch
        %343 = sbr.rel (%p341) target = $region20
      $region19: #{tpu_custom_call.1} parent=11 // pred_region
        _
      $region20: #{tpu_custom_call.1} parent=11 // pred_fallthru
        _
      // Predicated region
      $region21: #{tpu_custom_call.1} parent=11 // pred_check
        %p344 = pneg %p108
      $region22: #{tpu_custom_call.1} parent=11 // pred_check_branch
        %346 = sbr.rel (%p344) target = $region24
      $region23: #{tpu_custom_call.1} parent=11 // pred_region
        _
      $region24: #{tpu_custom_call.1} parent=11 // pred_fallthru
        _
      // Predicated region
      $region25: #{tpu_custom_call.1} parent=11 // pred_check
        %p347 = pneg %p129
      $region26: #{tpu_custom_call.1} parent=11 // pred_check_branch
        %349 = sbr.rel (%p347) target = $region28
      $region27: #{tpu_custom_call.1} parent=11 // pred_region
        _
      $region28: #{tpu_custom_call.1} parent=11 // pred_fallthru
        _
      // Predicated region
      $region29: #{tpu_custom_call.1} parent=11 // pred_check
        %p350 = pneg %p150
      $region30: #{tpu_custom_call.1} parent=11 // pred_check_branch
        %352 = sbr.rel (%p350) target = $region32
      $region31: #{tpu_custom_call.1} parent=11 // pred_region
        _
      $region32: #{tpu_custom_call.1} parent=11 // pred_fallthru
        _
      // Predicated region
      $region33: #{tpu_custom_call.1} parent=11 // pred_check
        %p353 = pneg %p171
      $region34: #{tpu_custom_call.1} parent=11 // pred_check_branch
        %355 = sbr.rel (%p353) target = $region36
      $region35: #{tpu_custom_call.1} parent=11 // pred_region
        _
      $region36: #{tpu_custom_call.1} parent=11 // pred_fallthru
        _
      // Predicated region
      $region37: #{tpu_custom_call.1} parent=11 // pred_check
        %p356 = pneg %p192
      $region38: #{tpu_custom_call.1} parent=11 // pred_check_branch
        %358 = sbr.rel (%p356) target = $region40
      $region39: #{tpu_custom_call.1} parent=11 // pred_region
        _
      $region40: #{tpu_custom_call.1} parent=11 // pred_fallthru
        _
      // Predicated region
      $region41: #{tpu_custom_call.1} parent=11 // pred_check
        %p359 = pneg %p213
      $region42: #{tpu_custom_call.1} parent=11 // pred_check_branch
        %361 = sbr.rel (%p359) target = $region44
      $region43: #{tpu_custom_call.1} parent=11 // pred_region
        _
      $region44: #{tpu_custom_call.1} parent=11 // pred_fallthru
        _
      // Predicated region
      $region45: #{tpu_custom_call.1} parent=11 // pred_check
        %p362 = pneg %p234
      $region46: #{tpu_custom_call.1} parent=11 // pred_check_branch
        %364 = sbr.rel (%p362) target = $region48
      $region47: #{tpu_custom_call.1} parent=11 // pred_region
        _
      $region48: #{tpu_custom_call.1} parent=11 // pred_fallthru
        _
      // Predicated region
      $region49: #{tpu_custom_call.1} parent=11 // pred_check
        %p365 = pneg %p255
      $region50: #{tpu_custom_call.1} parent=11 // pred_check_branch
        %367 = sbr.rel (%p365) target = $region52
      $region51: #{tpu_custom_call.1} parent=11 // pred_region
        _
      $region52: #{tpu_custom_call.1} parent=11 // pred_fallthru
        _
      // Predicated region
      $region53: #{tpu_custom_call.1} parent=11 // pred_check
        %p368 = pneg %p276
      $region54: #{tpu_custom_call.1} parent=11 // pred_check_branch
        %370 = sbr.rel (%p368) target = $region56
      $region55: #{tpu_custom_call.1} parent=11 // pred_region
        _
      $region56: #{tpu_custom_call.1} parent=11 // pred_fallthru
        _
      // Predicated region
      $region57: #{tpu_custom_call.1} parent=11 // pred_check
        %p371 = pneg %p297
      $region58: #{tpu_custom_call.1} parent=11 // pred_check_branch
        %373 = sbr.rel (%p371) target = $region60
      $region59: #{tpu_custom_call.1} parent=11 // pred_region
        _
      $region60: #{tpu_custom_call.1} parent=11 // pred_fallthru
        _
    $region12: #{tpu_custom_call.1} parent=5 // pred_fallthru
      _
    %p374 = scmp.lt.s32.totalorder %s19, 2
    // Predicated region
    $region61: #{tpu_custom_call.1} parent=5 // pred_check
      %p375 = pneg %p374
    $region62: #{tpu_custom_call.1} parent=5 // pred_check_branch
      %377 = sbr.rel (%p375) target = $region64
    $region63: #{tpu_custom_call.1} parent=5 // pred_region
      // Predicated region
      $region65: #{tpu_custom_call.1} parent=63 // pred_check
        %p378 = pneg %p39
      $region66: #{tpu_custom_call.1} parent=63 // pred_check_branch
        %380 = sbr.rel (%p378) target = $region68
      $region67: #{tpu_custom_call.1} parent=63 // pred_region
        %s381 = smul.u32 4, %s19
        %p382 = scmp.lt.s32.totalorder %s381, 7
        %s383 = scalar_select %p382, %s381, 7
        %s384 = smul.addr %s383, 8
        %s385 = scalar_lea.vmem %s0, %s384
        %s386 = smul.u32 4, %s19
      $region68: #{tpu_custom_call.1} parent=63 // pred_fallthru
        _
    $region64: #{tpu_custom_call.1} parent=5 // pred_fallthru
      _
    %p387 = scmp.le.s32.totalorder 1, %s19
    %p388 = scmp.lt.s32.totalorder %s19, 3
    %p389 = pnand %p387, %p388
    %p390 = pneg %p389
    // Predicated region
    $region69: #{tpu_custom_call.1} parent=5 // pred_check
      _
    $region70: #{tpu_custom_call.1} parent=5 // pred_check_branch
      %392 = sbr.rel (%p389) target = $region72
    $region71: #{tpu_custom_call.1} parent=5 // pred_region
      %s393 = ssub.s32 %s19, 1
      %s394 = smul.u32 4, %s24
      %p395 = scmp.lt.s32.totalorder %s394, 7
      %s396 = scalar_select %p395, %s394, 7
      %s397 = smul.addr %s396, 8
      %s398 = scalar_lea.vmem %s0, %s397
      %p399 = pneg %p45
      %p400 = pneg %p42
      %p401 = pneg %p66
      %p402 = pneg %p63
      %p403 = pneg %p87
      %p404 = pneg %p84
      %p405 = pneg %p108
      %p406 = pneg %p105
      %p407 = pneg %p129
      %p408 = pneg %p126
      %p409 = pneg %p150
      %p410 = pneg %p147
      %p411 = pneg %p171
      %p412 = pneg %p168
      %p413 = pneg %p192
      %p414 = pneg %p189
      %p415 = pneg %p213
      %p416 = pneg %p210
      %p417 = pneg %p234
      %p418 = pneg %p231
      %p419 = pneg %p255
      %p420 = pneg %p252
      %p421 = pneg %p276
      %p422 = pneg %p273
      %p423 = pneg %p297
      %p424 = pneg %p294
      %p425 = pneg %p323
      %p426 = pneg %p320
      %s427 = smul.u32 4, %s24
      %p428 = scmp.lt.s32.totalorder %s427, 7
      %s429 = scalar_select %p428, %s427, 7
      %s430 = smul.addr %s429, 8
      %s431 = scalar_lea.vmem %s13, %s430
      %s432 = smul.u32 4, %s24
      %p433 = scmp.lt.s32.totalorder %s432, 7
      %s434 = scalar_select %p433, %s432, 7
      %s435 = smul.addr %s434, 8
      %s436 = scalar_lea.vmem %s0, %s435
      %s437 = smul.u32 4, %s24
      %s438 = smul.u32 4, %s24
      %p439 = scmp.lt.s32.totalorder %s438, 7
      %s440 = scalar_select %p439, %s438, 7
      %s441 = smul.addr %s440, 8
      %s442 = scalar_lea.vmem %s13, %s441
      %s443 = smul.u32 4, %s24
      %v444 = vld [vmem:[%s436] sm:$0xff]
      %v445 = vld [vmem:[%s436 + $0x8] sm:$0xff]
      %v446 = vld [vmem:[%s436 + $0x10] sm:$0xff]
      %v447 = vld [vmem:[%s436 + $0x18] sm:$0xff]
      %v448 = vld [vmem:[%s1] sm:$0x1]
      %v450 = vlaneseq
      %v451 = vshrl.u32 %v450, 7
      %v452 = vsub.s32 0, %v451
      %v453 = vrot.slane %v448, %v452
      %v455 = vsub.f32 %v444, %v453
      %v456 = vsub.f32 %v445, %v453
      %v457 = vsub.f32 %v446, %v453
      %v458 = vsub.f32 %v447, %v453
      %v459 = vld [vmem:[%s2] sm:$0x1]
      %v461 = vlaneseq
      %v462 = vshrl.u32 %v461, 7
      %v463 = vsub.s32 0, %v462
      %v464 = vrot.slane %v459, %v463
      %v466 = vmul.f32 %v455, %v464
      %v467 = vmul.f32 %v456, %v464
      %v468 = vmul.f32 %v457, %v464
      %v469 = vmul.f32 %v458, %v464
      %v470 = vld [vmem:[%s5] sm:$0xff]
      %v471 = vld [vmem:[%s6] sm:$0x1]
      %v473 = vlaneseq
      %v474 = vshrl.u32 %v473, 7
      %v475 = vsub.s32 0, %v474
      %v476 = vrot.slane %v471, %v475
      %vm478 = vcmask 64512
      %v480 = vsel %vm478, %v466, 0
      %v483 = vsel %vm478, %v467, 0
      %v486 = vsel %vm478, %v468, 0
      %v489 = vsel %vm478, %v469, 0
      %491 = vmatprep.subr.mxu0 0.0
      %492 = vmatpush1.msra.mxu0 %v470
      %493 = vmatprep.subr.mxu0 0.0
      %494 = vmatpush1.msra.mxu0 0.0
      %495 = vmatprep.subr.mxu0 0.0
      %496 = vmatpush1.msra.mxu0 0.0
      %497 = vmatprep.subr.mxu0 0.0
      %498 = vmatpush1.msra.mxu0 0.0
      %499 = vmatprep.subr.mxu0 0.0
      %500 = vmatpush1.msra.mxu0 0.0
      %501 = vmatprep.subr.mxu0 0.0
      %502 = vmatpush1.msra.mxu0 0.0
      %503 = vmatprep.subr.mxu0 0.0
      %504 = vmatpush1.msra.mxu0 0.0
      %505 = vmatprep.subr.mxu0 0.0
      %506 = vmatpush1.msra.mxu0 0.0
      %507 = vmatprep.subr.mxu0 0.0
      %508 = vmatpush1.msra.mxu0 0.0
      %509 = vmatprep.subr.mxu0 0.0
      %510 = vmatpush1.msra.mxu0 0.0
      %511 = vmatprep.subr.mxu0 0.0
      %512 = vmatpush1.msra.mxu0 0.0
      %513 = vmatprep.subr.mxu0 0.0
      %514 = vmatpush1.msra.mxu0 0.0
      %515 = vmatprep.subr.mxu0 0.0
      %516 = vmatpush1.msra.mxu0 0.0
      %517 = vmatprep.subr.mxu0 0.0
      %518 = vmatpush1.msra.mxu0 0.0
      %519 = vmatprep.subr.mxu0 0.0
      %520 = vmatpush1.msra.mxu0 0.0
      %521 = vmatprep.subr.mxu0 0.0
      %522 = vmatpush1.msra.mxu0 0.0
      %523 = vmatprep.subr.mxu0 0.0
      %524 = vmatpush1.msra.mxu0 0.0
      %525 = vmatprep.subr.mxu0 0.0
      %526 = vmatpush1.msra.mxu0 0.0
      %527 = vmatprep.subr.mxu0 0.0
      %528 = vmatpush1.msra.mxu0 0.0
      %529 = vmatprep.subr.mxu0 0.0
      %530 = vmatpush1.msra.mxu0 0.0
      %531 = vmatprep.subr.mxu0 0.0
      %532 = vmatpush1.msra.mxu0 0.0
      %533 = vmatprep.subr.mxu0 0.0
      %534 = vmatpush1.msra.mxu0 0.0
      %535 = vmatprep.subr.mxu0 0.0
      %536 = vmatpush1.msra.mxu0 0.0
      %537 = vmatprep.subr.mxu0 0.0
      %538 = vmatpush1.msra.mxu0 0.0
      %539 = vmatprep.subr.mxu0 0.0
      %540 = vmatpush1.msra.mxu0 0.0
      %541 = vmatprep.subr.mxu0 0.0
      %542 = vmatpush1.msra.mxu0 0.0
      %543 = vmatprep.subr.mxu0 0.0
      %544 = vmatpush1.msra.mxu0 0.0
      %545 = vmatprep.subr.mxu0 0.0
      %546 = vmatpush1.msra.mxu0 0.0
      %547 = vmatprep.subr.mxu0 0.0
      %548 = vmatpush1.msra.mxu0 0.0
      %549 = vmatprep.subr.mxu0 0.0
      %550 = vmatpush1.msra.mxu0 0.0
      %551 = vmatprep.subr.mxu0 0.0
      %552 = vmatpush1.msra.mxu0 0.0
      %553 = vmatprep.subr.mxu0 0.0
      %554 = vmatpush1.msra.mxu0 0.0
      %555 = vmatprep.mubr.f32.mxu0 0.0
      %556 = vmatmul.mubr.f32.gmra.mrb[0].mxu0 %v480
      %v557 = vpop.f32.mrb[0].mxu0
      %v558 = vadd.f32 %v476, %v557
      %v559 = vpop.f32.mrb[0].mxu0
      %560 = vmatprep.mubr.f32.mxu0 0.0
      %561 = vmatmul.mubr.f32.gmra.mrb[0].mxu0 %v483
      %v562 = vpop.f32.mrb[0].mxu0
      %v563 = vadd.f32 %v476, %v562
      %v564 = vpop.f32.mrb[0].mxu0
      %565 = vmatprep.mubr.f32.mxu0 0.0
      %566 = vmatmul.mubr.f32.gmra.mrb[0].mxu0 %v486
      %v567 = vpop.f32.mrb[0].mxu0
      %v568 = vadd.f32 %v476, %v567
      %v569 = vpop.f32.mrb[0].mxu0
      %570 = vmatprep.mubr.f32.mxu0 0.0
      %571 = vmatmul.mubr.f32.gmra.mrb[0].mxu0 %v489
      %v572 = vpop.f32.mrb[0].mxu0
      %v573 = vadd.f32 %v476, %v572
      %v574 = vpop.f32.mrb[0].mxu0
      %575 = vdwg.mxu0
      %v576 = vtanh.pop %v558
      %v577 = vtanh.pop %v563
      %v578 = vtanh.pop %v568
      %v579 = vtanh.pop %v573
      %v580 = vld [vmem:[%s7] sm:$0xff]
      %v581 = vld [vmem:[%s7 + $0x8] sm:$0xff]
      %v582 = vld [vmem:[%s7 + $0x10] sm:$0xff]
      %v583 = vld [vmem:[%s7 + $0x18] sm:$0xff]
      %v584 = vld [vmem:[%s8] sm:$0x1]
      %v586 = vlaneseq
      %v587 = vshrl.u32 %v586, 7
      %v588 = vsub.s32 0, %v587
      %v589 = vrot.slane %v584, %v588
      %vm591 = vcmask 261120
      %v593 = vsel %vm591, %v576, 0
      %v596 = vsel %vm591, %v577, 0
      %v599 = vsel %vm591, %v578, 0
      %v602 = vsel %vm591, %v579, 0
      %604 = vmatprep.subr.mxu0 0.0
      %605 = vmatpush1.msra.mxu0 %v580
      %606 = vmatprep.subr.mxu0 0.0
      %607 = vmatpush1.msra.mxu0 %v581
      %608 = vmatprep.subr.mxu0 0.0
      %609 = vmatpush1.msra.mxu0 %v582
      %610 = vmatprep.subr.mxu0 0.0
      %611 = vmatpush1.msra.mxu0 %v583
      %612 = vmatprep.subr.mxu0 0.0
      %613 = vmatpush1.msra.mxu0 0.0
      %614 = vmatprep.subr.mxu0 0.0
      %615 = vmatpush1.msra.mxu0 0.0
      %616 = vmatprep.subr.mxu0 0.0
      %617 = vmatpush1.msra.mxu0 0.0
      %618 = vmatprep.subr.mxu0 0.0
      %619 = vmatpush1.msra.mxu0 0.0
      %620 = vmatprep.subr.mxu0 0.0
      %621 = vmatpush1.msra.mxu0 0.0
      %622 = vmatprep.subr.mxu0 0.0
      %623 = vmatpush1.msra.mxu0 0.0
      %624 = vmatprep.subr.mxu0 0.0
      %625 = vmatpush1.msra.mxu0 0.0
      %626 = vmatprep.subr.mxu0 0.0
      %627 = vmatpush1.msra.mxu0 0.0
      %628 = vmatprep.subr.mxu0 0.0
      %629 = vmatpush1.msra.mxu0 0.0
      %630 = vmatprep.subr.mxu0 0.0
      %631 = vmatpush1.msra.mxu0 0.0
      %632 = vmatprep.subr.mxu0 0.0
      %633 = vmatpush1.msra.mxu0 0.0
      %634 = vmatprep.subr.mxu0 0.0
      %635 = vmatpush1.msra.mxu0 0.0
      %636 = vmatprep.subr.mxu0 0.0
      %637 = vmatpush1.msra.mxu0 0.0
      %638 = vmatprep.subr.mxu0 0.0
      %639 = vmatpush1.msra.mxu0 0.0
      %640 = vmatprep.subr.mxu0 0.0
      %641 = vmatpush1.msra.mxu0 0.0
      %642 = vmatprep.subr.mxu0 0.0
      %643 = vmatpush1.msra.mxu0 0.0
      %644 = vmatprep.subr.mxu0 0.0
      %645 = vmatpush1.msra.mxu0 0.0
      %646 = vmatprep.subr.mxu0 0.0
      %647 = vmatpush1.msra.mxu0 0.0
      %648 = vmatprep.subr.mxu0 0.0
      %649 = vmatpush1.msra.mxu0 0.0
      %650 = vmatprep.subr.mxu0 0.0
      %651 = vmatpush1.msra.mxu0 0.0
      %652 = vmatprep.subr.mxu0 0.0
      %653 = vmatpush1.msra.mxu0 0.0
      %654 = vmatprep.subr.mxu0 0.0
      %655 = vmatpush1.msra.mxu0 0.0
      %656 = vmatprep.subr.mxu0 0.0
      %657 = vmatpush1.msra.mxu0 0.0
      %658 = vmatprep.subr.mxu0 0.0
      %659 = vmatpush1.msra.mxu0 0.0
      %660 = vmatprep.subr.mxu0 0.0
      %661 = vmatpush1.msra.mxu0 0.0
      %662 = vmatprep.subr.mxu0 0.0
      %663 = vmatpush1.msra.mxu0 0.0
      %664 = vmatprep.subr.mxu0 0.0
      %665 = vmatpush1.msra.mxu0 0.0
      %666 = vmatprep.subr.mxu0 0.0
      %667 = vmatpush1.msra.mxu0 0.0
      %668 = vmatprep.mubr.f32.mxu0 0.0
      %669 = vmatmul.mubr.f32.gmra.mrb[0].mxu0 %v593
      %v670 = vpop.f32.mrb[0].mxu0
      %v671 = vadd.f32 %v589, %v670
      %v672 = vpop.f32.mrb[0].mxu0
      %673 = vmatprep.mubr.f32.mxu0 0.0
      %674 = vmatmul.mubr.f32.gmra.mrb[0].mxu0 %v596
      %v675 = vpop.f32.mrb[0].mxu0
      %v676 = vadd.f32 %v589, %v675
      %v677 = vpop.f32.mrb[0].mxu0
      %678 = vmatprep.mubr.f32.mxu0 0.0
      %679 = vmatmul.mubr.f32.gmra.mrb[0].mxu0 %v599
      %v680 = vpop.f32.mrb[0].mxu0
      %v681 = vadd.f32 %v589, %v680
      %v682 = vpop.f32.mrb[0].mxu0
      %683 = vmatprep.mubr.f32.mxu0 0.0
      %684 = vmatmul.mubr.f32.gmra.mrb[0].mxu0 %v602
      %v685 = vpop.f32.mrb[0].mxu0
      %v686 = vadd.f32 %v589, %v685
      %v687 = vpop.f32.mrb[0].mxu0
      %688 = vdwg.mxu0
      %v689 = vtanh.pop %v671
      %v690 = vtanh.pop %v676
      %v691 = vtanh.pop %v681
      %v692 = vtanh.pop %v686
      %v693 = vld [vmem:[%s9] sm:$0xff]
      %v694 = vld [vmem:[%s9 + $0x8] sm:$0xff]
      %v695 = vld [vmem:[%s9 + $0x10] sm:$0xff]
      %v696 = vld [vmem:[%s9 + $0x18] sm:$0xff]
      %v697 = vld [vmem:[%s10] sm:$0x1]
      %v699 = vlaneseq
      %v700 = vshrl.u32 %v699, 7
      %v701 = vsub.s32 0, %v700
      %v702 = vrot.slane %v697, %v701
      %v705 = vsel %vm591, %v689, 0
      %v708 = vsel %vm591, %v690, 0
      %v711 = vsel %vm591, %v691, 0
      %v714 = vsel %vm591, %v692, 0
      %716 = vmatprep.subr.mxu0 0.0
      %717 = vmatpush1.msra.mxu0 %v693
      %718 = vmatprep.subr.mxu0 0.0
      %719 = vmatpush1.msra.mxu0 %v694
      %720 = vmatprep.subr.mxu0 0.0
      %721 = vmatpush1.msra.mxu0 %v695
      %722 = vmatprep.subr.mxu0 0.0
      %723 = vmatpush1.msra.mxu0 %v696
      %724 = vmatprep.subr.mxu0 0.0
      %725 = vmatpush1.msra.mxu0 0.0
      %726 = vmatprep.subr.mxu0 0.0
      %727 = vmatpush1.msra.mxu0 0.0
      %728 = vmatprep.subr.mxu0 0.0
      %729 = vmatpush1.msra.mxu0 0.0
      %730 = vmatprep.subr.mxu0 0.0
      %731 = vmatpush1.msra.mxu0 0.0
      %732 = vmatprep.subr.mxu0 0.0
      %733 = vmatpush1.msra.mxu0 0.0
      %734 = vmatprep.subr.mxu0 0.0
      %735 = vmatpush1.msra.mxu0 0.0
      %736 = vmatprep.subr.mxu0 0.0
      %737 = vmatpush1.msra.mxu0 0.0
      %738 = vmatprep.subr.mxu0 0.0
      %739 = vmatpush1.msra.mxu0 0.0
      %740 = vmatprep.subr.mxu0 0.0
      %741 = vmatpush1.msra.mxu0 0.0
      %742 = vmatprep.subr.mxu0 0.0
      %743 = vmatpush1.msra.mxu0 0.0
      %744 = vmatprep.subr.mxu0 0.0
      %745 = vmatpush1.msra.mxu0 0.0
      %746 = vmatprep.subr.mxu0 0.0
      %747 = vmatpush1.msra.mxu0 0.0
      %748 = vmatprep.subr.mxu0 0.0
      %749 = vmatpush1.msra.mxu0 0.0
      %750 = vmatprep.subr.mxu0 0.0
      %751 = vmatpush1.msra.mxu0 0.0
      %752 = vmatprep.subr.mxu0 0.0
      %753 = vmatpush1.msra.mxu0 0.0
      %754 = vmatprep.subr.mxu0 0.0
      %755 = vmatpush1.msra.mxu0 0.0
      %756 = vmatprep.subr.mxu0 0.0
      %757 = vmatpush1.msra.mxu0 0.0
      %758 = vmatprep.subr.mxu0 0.0
      %759 = vmatpush1.msra.mxu0 0.0
      %760 = vmatprep.subr.mxu0 0.0
      %761 = vmatpush1.msra.mxu0 0.0
      %762 = vmatprep.subr.mxu0 0.0
      %763 = vmatpush1.msra.mxu0 0.0
      %764 = vmatprep.subr.mxu0 0.0
      %765 = vmatpush1.msra.mxu0 0.0
      %766 = vmatprep.subr.mxu0 0.0
      %767 = vmatpush1.msra.mxu0 0.0
      %768 = vmatprep.subr.mxu0 0.0
      %769 = vmatpush1.msra.mxu0 0.0
      %770 = vmatprep.subr.mxu0 0.0
      %771 = vmatpush1.msra.mxu0 0.0
      %772 = vmatprep.subr.mxu0 0.0
      %773 = vmatpush1.msra.mxu0 0.0
      %774 = vmatprep.subr.mxu0 0.0
      %775 = vmatpush1.msra.mxu0 0.0
      %776 = vmatprep.subr.mxu0 0.0
      %777 = vmatpush1.msra.mxu0 0.0
      %778 = vmatprep.subr.mxu0 0.0
      %779 = vmatpush1.msra.mxu0 0.0
      %780 = vmatprep.mubr.f32.mxu0 0.0
      %781 = vmatmul.mubr.f32.gmra.mrb[0].mxu0 %v705
      %v782 = vpop.f32.mrb[0].mxu0
      %v783 = vadd.f32 %v702, %v782
      %v784 = vpop.f32.mrb[0].mxu0
      %785 = vmatprep.mubr.f32.mxu0 0.0
      %786 = vmatmul.mubr.f32.gmra.mrb[0].mxu0 %v708
      %v787 = vpop.f32.mrb[0].mxu0
      %v788 = vadd.f32 %v702, %v787
      %v789 = vpop.f32.mrb[0].mxu0
      %790 = vmatprep.mubr.f32.mxu0 0.0
      %791 = vmatmul.mubr.f32.gmra.mrb[0].mxu0 %v711
      %v792 = vpop.f32.mrb[0].mxu0
      %v793 = vadd.f32 %v702, %v792
      %v794 = vpop.f32.mrb[0].mxu0
      %795 = vmatprep.mubr.f32.mxu0 0.0
      %796 = vmatmul.mubr.f32.gmra.mrb[0].mxu0 %v714
      %v797 = vpop.f32.mrb[0].mxu0
      %v798 = vadd.f32 %v702, %v797
      %v799 = vpop.f32.mrb[0].mxu0
      %800 = vdwg.mxu0
      %v801 = vld [vmem:[%s4] sm:$0x1]
      %v803 = vlaneseq
      %v804 = vshrl.u32 %v803, 7
      %v805 = vsub.s32 0, %v804
      %v806 = vrot.slane %v801, %v805
      %v808 = vmul.f32 %v806, %v783
      %v809 = vmul.f32 %v806, %v788
      %v810 = vmul.f32 %v806, %v793
      %v811 = vmul.f32 %v806, %v798
      %v812 = vld [vmem:[%s3] sm:$0x1]
      %v814 = vlaneseq
      %v815 = vshrl.u32 %v814, 7
      %v816 = vsub.s32 0, %v815
      %v817 = vrot.slane %v812, %v816
      %v819 = vadd.f32 %v808, %v817
      %v820 = vadd.f32 %v809, %v817
      %v821 = vadd.f32 %v810, %v817
      %v822 = vadd.f32 %v811, %v817
      %v823 = vld [vmem:[%s11] sm:$0xff]
      %v824 = vld [vmem:[%s12] sm:$0x1]
      %v826 = vlaneseq
      %v827 = vshrl.u32 %v826, 7
      %v828 = vsub.s32 0, %v827
      %v829 = vrot.slane %v824, %v828
      %v832 = vsel %vm478, %v444, 0
      %v835 = vsel %vm478, %v445, 0
      %v838 = vsel %vm478, %v446, 0
      %v841 = vsel %vm478, %v447, 0
      %843 = vmatprep.subr.mxu0 0.0
      %844 = vmatpush1.msra.mxu0 %v823
      %845 = vmatprep.subr.mxu0 0.0
      %846 = vmatpush1.msra.mxu0 0.0
      %847 = vmatprep.subr.mxu0 0.0
      %848 = vmatpush1.msra.mxu0 0.0
      %849 = vmatprep.subr.mxu0 0.0
      %850 = vmatpush1.msra.mxu0 0.0
      %851 = vmatprep.subr.mxu0 0.0
      %852 = vmatpush1.msra.mxu0 0.0
      %853 = vmatprep.subr.mxu0 0.0
      %854 = vmatpush1.msra.mxu0 0.0
      %855 = vmatprep.subr.mxu0 0.0
      %856 = vmatpush1.msra.mxu0 0.0
      %857 = vmatprep.subr.mxu0 0.0
      %858 = vmatpush1.msra.mxu0 0.0
      %859 = vmatprep.subr.mxu0 0.0
      %860 = vmatpush1.msra.mxu0 0.0
      %861 = vmatprep.subr.mxu0 0.0
      %862 = vmatpush1.msra.mxu0 0.0
      %863 = vmatprep.subr.mxu0 0.0
      %864 = vmatpush1.msra.mxu0 0.0
      %865 = vmatprep.subr.mxu0 0.0
      %866 = vmatpush1.msra.mxu0 0.0
      %867 = vmatprep.subr.mxu0 0.0
      %868 = vmatpush1.msra.mxu0 0.0
      %869 = vmatprep.subr.mxu0 0.0
      %870 = vmatpush1.msra.mxu0 0.0
      %871 = vmatprep.subr.mxu0 0.0
      %872 = vmatpush1.msra.mxu0 0.0
      %873 = vmatprep.subr.mxu0 0.0
      %874 = vmatpush1.msra.mxu0 0.0
      %875 = vmatprep.subr.mxu0 0.0
      %876 = vmatpush1.msra.mxu0 0.0
      %877 = vmatprep.subr.mxu0 0.0
      %878 = vmatpush1.msra.mxu0 0.0
      %879 = vmatprep.subr.mxu0 0.0
      %880 = vmatpush1.msra.mxu0 0.0
      %881 = vmatprep.subr.mxu0 0.0
      %882 = vmatpush1.msra.mxu0 0.0
      %883 = vmatprep.subr.mxu0 0.0
      %884 = vmatpush1.msra.mxu0 0.0
      %885 = vmatprep.subr.mxu0 0.0
      %886 = vmatpush1.msra.mxu0 0.0
      %887 = vmatprep.subr.mxu0 0.0
      %888 = vmatpush1.msra.mxu0 0.0
      %889 = vmatprep.subr.mxu0 0.0
      %890 = vmatpush1.msra.mxu0 0.0
      %891 = vmatprep.subr.mxu0 0.0
      %892 = vmatpush1.msra.mxu0 0.0
      %893 = vmatprep.subr.mxu0 0.0
      %894 = vmatpush1.msra.mxu0 0.0
      %895 = vmatprep.subr.mxu0 0.0
      %896 = vmatpush1.msra.mxu0 0.0
      %897 = vmatprep.subr.mxu0 0.0
      %898 = vmatpush1.msra.mxu0 0.0
      %899 = vmatprep.subr.mxu0 0.0
      %900 = vmatpush1.msra.mxu0 0.0
      %901 = vmatprep.subr.mxu0 0.0
      %902 = vmatpush1.msra.mxu0 0.0
      %903 = vmatprep.subr.mxu0 0.0
      %904 = vmatpush1.msra.mxu0 0.0
      %905 = vmatprep.subr.mxu0 0.0
      %906 = vmatpush1.msra.mxu0 0.0
      %907 = vmatprep.mubr.f32.mxu0 0.0
      %908 = vmatmul.mubr.f32.gmra.mrb[0].mxu0 %v832
      %v909 = vpop.f32.mrb[0].mxu0
      %v910 = vadd.f32 %v829, %v909
      %v911 = vpop.f32.mrb[0].mxu0
      %912 = vmatprep.mubr.f32.mxu0 0.0
      %913 = vmatmul.mubr.f32.gmra.mrb[0].mxu0 %v835
      %v914 = vpop.f32.mrb[0].mxu0
      %v915 = vadd.f32 %v829, %v914
      %v916 = vpop.f32.mrb[0].mxu0
      %917 = vmatprep.mubr.f32.mxu0 0.0
      %918 = vmatmul.mubr.f32.gmra.mrb[0].mxu0 %v838
      %v919 = vpop.f32.mrb[0].mxu0
      %v920 = vadd.f32 %v829, %v919
      %v921 = vpop.f32.mrb[0].mxu0
      %922 = vmatprep.mubr.f32.mxu0 0.0
      %923 = vmatmul.mubr.f32.gmra.mrb[0].mxu0 %v841
      %v924 = vpop.f32.mrb[0].mxu0
      %v925 = vadd.f32 %v829, %v924
      %v926 = vpop.f32.mrb[0].mxu0
      %927 = vdwg.mxu0
      %932 = vrot.lane.b32.xlu0 %v819, 4
      %v933 = vpop.permute.xlu0 %932
      %934 = vrot.lane.b32.xlu0 %v820, 4
      %v935 = vpop.permute.xlu0 %934
      %936 = vrot.lane.b32.xlu0 %v821, 4
      %v937 = vpop.permute.xlu0 %936
      %938 = vrot.lane.b32.xlu0 %v822, 4
      %v939 = vpop.permute.xlu0 %938
      %vm944 = vcmask 31744
      %v945 = vsel %vm944, %v910, %v933
      %v946 = vsel %vm944, %v915, %v935
      %v947 = vsel %vm944, %v920, %v937
      %v948 = vsel %vm944, %v925, %v939
      %949 = vst.msk [vmem:[%s442] sm:$0xff] %vm478, %v945
      %950 = vst.msk [vmem:[%s442 + $0x8] sm:$0xff] %vm478, %v946
      %951 = vst.msk [vmem:[%s442 + $0x10] sm:$0xff] %vm478, %v947
      %952 = vst.msk [vmem:[%s442 + $0x18] sm:$0xff] %vm478, %v948
      %s953 = smul.u32 4, %s24
      %p954 = scmp.lt.s32.totalorder %s953, 7
      %s955 = scalar_select %p954, %s953, 7
      %s956 = smul.addr %s955, 8
      %s957 = scalar_lea.vmem %s13, %s956
      // Predicated region
      $region73: #{tpu_custom_call.1} parent=71 // pred_check
        %p958 = pneg %p320
      $region74: #{tpu_custom_call.1} parent=71 // pred_check_branch
        %960 = sbr.rel (%p958) target = $region76
      $region75: #{tpu_custom_call.1} parent=71 // pred_region
        %s961 = smul.u32 4, %s24
      $region76: #{tpu_custom_call.1} parent=71 // pred_fallthru
        _
    $region72: #{tpu_custom_call.1} parent=5 // pred_fallthru
      _
    %p962 = scmp.le.s32.totalorder 2, %s19
    // Predicated region
    $region77: #{tpu_custom_call.1} parent=5 // pred_check
      %p963 = pneg %p962
    $region78: #{tpu_custom_call.1} parent=5 // pred_check_branch
      %965 = sbr.rel (%p963) target = $region80
    $region79: #{tpu_custom_call.1} parent=5 // pred_region
      %s966 = ssub.s32 %s19, 2
      // Predicated region
      $region81: #{tpu_custom_call.1} parent=79 // pred_check
        %p967 = pneg %p326
      $region82: #{tpu_custom_call.1} parent=79 // pred_check_branch
        %969 = sbr.rel (%p967) target = $region84
      $region83: #{tpu_custom_call.1} parent=79 // pred_region
        %s970 = smul.u32 4, %s25
        %p971 = scmp.lt.s32.totalorder %s970, 7
        %s972 = scalar_select %p971, %s970, 7
        %s973 = smul.addr %s972, 8
        %s974 = scalar_lea.vmem %s13, %s973
      $region84: #{tpu_custom_call.1} parent=79 // pred_fallthru
        _
    $region80: #{tpu_custom_call.1} parent=5 // pred_fallthru
      _
  $region6: #{tpu_custom_call.1} parent=0 // loop_footer
    %s23 = sadd.s32 1, %s19
  $region7: #{tpu_custom_call.1} parent=0 // loop_footer_branch
    %18 = sbr.rel target = $region3
  $region8: #{tpu_custom_call.1} parent=0 // loop_exit
    _

</llo_original>
